<compile_context>
chip_gen: v7x
topology: tpu7x:2x2x1
jax: 0.10.0
libtpu: 0.0.40
codegen_flags: <defaults>
</compile_context>

<pallas_src>
import functools

import jax
import jax.numpy as jnp
from jax import lax
from jax.experimental import pallas as pl
from jax.experimental.pallas import tpu as pltpu

EPS = 1e-5                              # nn.BatchNorm1d default
_LANES = 128
_FUSED_MAX_BYTES = 2 * 1024 * 1024      # f32 slab size below which we fuse to 1 call


def _cdiv(a, b):
    return (a + b - 1) // b


def _round_up(a, b):
    return _cdiv(a, b) * b


def _vmem_budget():
    """Return (per-block byte target for the streamed input, scoped VMEM limit)."""
    try:
        phys = int(pltpu.get_tpu_info().vmem_capacity_bytes)
    except Exception:
        phys = 64 * 1024 * 1024                      # assume smallest (v7x-like) VMEM
    if phys >= 100 * 1024 * 1024:                    # v5e / v6e: 128 MiB physical
        return 8 * 1024 * 1024, 64 * 1024 * 1024
    return 4 * 1024 * 1024, 40 * 1024 * 1024         # v7x: 64 MiB physical


def _pick_row_tile(np_rows, hp, block_bytes, align):
    """As many rows as fit the (f32-equivalent) byte budget, sublane-aligned."""
    rows = max(align, block_bytes // (hp * 4))
    rows -= rows % align
    rows = max(align, rows)
    return int(min(rows, _round_up(np_rows, align)))


# ----------------------------------------------------------------------------
# Kernels
# ----------------------------------------------------------------------------
def _stats_kernel(x_ref, shift_ref, psum_ref, psq_ref):
    """Pass 1: accumulate shifted per-lane sum / sum-of-squares for one shard."""
    j = pl.program_id(1)

    @pl.when(j == 0)
    def _init():
        psum_ref[...] = jnp.zeros_like(psum_ref)
        psq_ref[...] = jnp.zeros_like(psq_ref)

    xc = x_ref[...].astype(jnp.float32) - shift_ref[...]
    # (1, Hp) partials broadcast-add into the resident (8, Hp) output block.
    psum_ref[...] += jnp.sum(xc, axis=0, keepdims=True)
    psq_ref[...] += jnp.sum(xc * xc, axis=0, keepdims=True)


def _normalize_kernel(x_ref, scale_ref, off_ref, o_ref):
    """Pass 2: y = x * scale + off (mem-bound; one mul + one add per element)."""
    x = x_ref[...].astype(jnp.float32)
    o_ref[...] = (x * scale_ref[...] + off_ref[...]).astype(o_ref.dtype)


def _fused_kernel(x_ref, shift_ref, g_ref, b_ref, o_ref, *,
                  n_total, n_groups, group_width):
    """Small-problem path: stats + normalize in a single invocation."""
    xc = x_ref[...].astype(jnp.float32) - shift_ref[...]
    s0 = jnp.sum(xc, axis=0, keepdims=True)
    q0 = jnp.sum(xc * xc, axis=0, keepdims=True)
    s, q = s0, q0
    # Fold the k lane groups so every lane holds its full per-channel statistic
    # (rotations use the XLU slot, essentially free next to the VPU work).
    for j in range(1, n_groups):
        s = s + pltpu.roll(s0, shift=j * group_width, axis=1)
        q = q + pltpu.roll(q0, shift=j * group_width, axis=1)
    inv_n = 1.0 / float(n_total)
    mean_c = s * inv_n                                    # E[x - shift]
    var = jnp.maximum(q * inv_n - mean_c * mean_c, 0.0)   # biased (training mode)
    scale = g_ref[...] * lax.rsqrt(var + EPS)
    o_ref[...] = ((xc - mean_c) * scale + b_ref[...]).astype(o_ref.dtype)


# ----------------------------------------------------------------------------
# Wrapper
# ----------------------------------------------------------------------------
def batch_norm_overtime(x, gamma, beta, *, _force_two_pass=False, _block_bytes=None):
    """x: (seq_len, batch, hidden) -> (seq_len, batch, hidden)."""
    T, B, H = x.shape
    N = T * B
    itemsize = jnp.dtype(x.dtype).itemsize
    align = {4: 8, 2: 16, 1: 32}.get(itemsize, 8)         # sublane packing per dtype

    block_bytes, vmem_limit = _vmem_budget()
    if _block_bytes is not None:
        block_bytes = _block_bytes

    # ---- Layout: lane-dense packing / channel padding ------------------------
    if H < _LANES and _LANES % H == 0:
        k = _LANES // H                  # pack k rows into each 128-lane row
        Hc = H
    else:
        k = 1
        Hc = _round_up(H, _LANES)        # pad channels so stores stay lane-dense
    Hp = k * Hc

    xf = x.reshape(N, H)
    gamma_c = gamma.astype(jnp.float32).reshape(H)
    beta_c = beta.astype(jnp.float32).reshape(H)
    if Hc > H:
        xf = jnp.pad(xf, ((0, 0), (0, Hc - H)))
        gamma_c = jnp.pad(gamma_c, (0, Hc - H), constant_values=1.0)
        beta_c = jnp.pad(beta_c, (0, Hc - H))
    shift_c = xf[0].astype(jnp.float32)   # per-channel shift for robust variance

    np0 = _cdiv(N, k)                     # packed rows holding real data
    fused = (not _force_two_pass) and (
        _round_up(np0, align) * Hp * 4 <= _FUSED_MAX_BYTES)

    if fused:
        Np = _round_up(np0, align)
        grid_c = grid_s = 1
        tn = Np
    else:
        tn = _pick_row_tile(np0, Hp, block_bytes, align)
        ntiles = _cdiv(np0, tn)
        grid_c = 2 if ntiles >= 2 else 1  # stats sharded over v7x's two TensorCores
        grid_s = _cdiv(ntiles, grid_c)
        Np = grid_c * grid_s * tn

    # ---- Row padding: copies of row 0, so (pad - shift) == 0 in the stats ----
    pad_rows = Np * k - N
    if pad_rows:
        xf = jnp.concatenate([xf, jnp.broadcast_to(xf[0:1], (pad_rows, Hc))], axis=0)
    x2 = xf.reshape(Np, Hp)
    shift2 = jnp.tile(shift_c, k).reshape(1, Hp)

    if fused:
        g2 = jnp.tile(gamma_c, k).reshape(1, Hp)
        b2 = jnp.tile(beta_c, k).reshape(1, Hp)
        y2 = pl.pallas_call(
            functools.partial(_fused_kernel, n_total=N, n_groups=k, group_width=Hc),
            out_shape=jax.ShapeDtypeStruct((Np, Hp), x.dtype),
            grid=(1,),
            in_specs=[
                pl.BlockSpec((Np, Hp), lambda i: (0, 0)),
                pl.BlockSpec((1, Hp), lambda i: (0, 0)),
                pl.BlockSpec((1, Hp), lambda i: (0, 0)),
                pl.BlockSpec((1, Hp), lambda i: (0, 0)),
            ],
            out_specs=pl.BlockSpec((Np, Hp), lambda i: (0, 0)),
            compiler_params=pltpu.CompilerParams(
                dimension_semantics=("arbitrary",),
                vmem_limit_bytes=vmem_limit),
        )(x2, shift2, g2, b2)
    else:
        # ---- Pass 1: per-shard partial shifted sums ---------------------------
        steps = grid_s
        psum, psq = pl.pallas_call(
            _stats_kernel,
            out_shape=(
                jax.ShapeDtypeStruct((grid_c * 8, Hp), jnp.float32),
                jax.ShapeDtypeStruct((grid_c * 8, Hp), jnp.float32),
            ),
            grid=(grid_c, grid_s),
            in_specs=[
                pl.BlockSpec((tn, Hp), lambda c, j: (c * steps + j, 0)),
                pl.BlockSpec((1, Hp), lambda c, j: (0, 0)),
            ],
            out_specs=(
                pl.BlockSpec((8, Hp), lambda c, j: (c, 0)),
                pl.BlockSpec((8, Hp), lambda c, j: (c, 0)),
            ),
            compiler_params=pltpu.CompilerParams(
                dimension_semantics=("parallel", "arbitrary"),
                vmem_limit_bytes=vmem_limit),
        )(x2, shift2)

        # ---- Finalize on tiny arrays in the wrapper (trivial XLA ops) ---------
        s = psum.reshape(grid_c, 8, Hp)[:, 0, :].sum(axis=0)      # (Hp,)
        q = psq.reshape(grid_c, 8, Hp)[:, 0, :].sum(axis=0)
        s = s.reshape(k, Hc).sum(axis=0)                          # fold lane groups
        q = q.reshape(k, Hc).sum(axis=0)
        mean_c = s / N                                            # E[x - shift]
        var = jnp.maximum(q / N - mean_c * mean_c, 0.0)           # biased variance
        scale_c = gamma_c * lax.rsqrt(var + EPS)
        off_c = beta_c - (shift_c + mean_c) * scale_c
        scale2 = jnp.tile(scale_c, k).reshape(1, Hp)
        off2 = jnp.tile(off_c, k).reshape(1, Hp)

        # ---- Pass 2: y = x * scale + off --------------------------------------
        y2 = pl.pallas_call(
            _normalize_kernel,
            out_shape=jax.ShapeDtypeStruct((Np, Hp), x.dtype),
            grid=(Np // tn,),
            in_specs=[
                pl.BlockSpec((tn, Hp), lambda i: (i, 0)),
                pl.BlockSpec((1, Hp), lambda i: (0, 0)),
                pl.BlockSpec((1, Hp), lambda i: (0, 0)),
            ],
            out_specs=pl.BlockSpec((tn, Hp), lambda i: (i, 0)),
            compiler_params=pltpu.CompilerParams(
                dimension_semantics=("parallel",),
                vmem_limit_bytes=vmem_limit),
        )(x2, scale2, off2)

    return y2.reshape(Np * k, Hc)[:N, :H].reshape(T, B, H)


def batch_norm_overtime_ref(x, gamma, beta):
    # Pure-JAX reference of the same training-mode BatchNorm1d forward.
    mean = jnp.mean(x, axis=(0, 1), keepdims=True)
    var = jnp.mean((x - mean) ** 2, axis=(0, 1), keepdims=True)
    return (x - mean) * lax.rsqrt(var + EPS) * gamma + beta


if __name__ == "__main__":
    key = jax.random.PRNGKey(0)
    k0, k1, k2, k3 = jax.random.split(key, 4)

    # 1) IndRNN pixelMNIST shape: small -> fused single-call path.
    seq_len, batch, hidden = 8, 16, 32
    x = jax.random.normal(k0, (seq_len, batch, hidden), dtype=jnp.float32)
    gamma = jnp.ones((hidden,), dtype=jnp.float32)   # nn.BatchNorm1d default init
    beta = jnp.zeros((hidden,), dtype=jnp.float32)
    y = jax.block_until_ready(batch_norm_overtime(x, gamma, beta))
    y_ref = batch_norm_overtime_ref(x, gamma, beta)
    assert y.shape == (seq_len, batch, hidden)
    assert jnp.allclose(y, y_ref, atol=1e-4, rtol=1e-4)

    # 2) Two-pass path (stats grid with 2-way core sharding + wrapper finalize),
    #    forced via a small block budget; non-trivial affine and nonzero mean.
    x2 = jax.random.normal(k1, (64, 48, 96), dtype=jnp.float32) * 0.5 + 3.0
    g2 = 1.0 + 0.1 * jax.random.normal(k2, (96,), dtype=jnp.float32)
    b2 = 0.1 * jax.random.normal(k3, (96,), dtype=jnp.float32)
    y2 = jax.block_until_ready(
        batch_norm_overtime(x2, g2, b2, _force_two_pass=True,
                            _block_bytes=256 * 1024))
    y2_ref = batch_norm_overtime_ref(x2, g2, b2)
    assert jnp.allclose(y2, y2_ref, atol=2e-4, rtol=2e-4)

    # 3) Ragged shape: exercises channel padding (24 -> 128) and row padding.
    x3 = jax.random.normal(k0, (7, 13, 24), dtype=jnp.float32)
    g3 = jnp.ones((24,), dtype=jnp.float32)
    b3 = jnp.zeros((24,), dtype=jnp.float32)
    y3 = jax.block_until_ready(batch_norm_overtime(x3, g3, b3))
    y3_ref = batch_norm_overtime_ref(x3, g3, b3)
    assert jnp.allclose(y3, y3_ref, atol=1e-4, rtol=1e-4)

    print("KERNEL_OK")
</pallas_src>

<mosaic_0001>
module attributes {stable_mosaic.version = 11 : i64} {
  func.func @_fused_kernel(%arg0: i32, %arg1: memref<32x128xf32, #tpu.memory_space<vmem>>, %arg2: memref<1x128xf32, #tpu.memory_space<vmem>>, %arg3: memref<1x128xf32, #tpu.memory_space<vmem>>, %arg4: memref<1x128xf32, #tpu.memory_space<vmem>>, %arg5: memref<32x128xf32, #tpu.memory_space<vmem>>) attributes {dimension_semantics = [#tpu.dimension_semantics<arbitrary>], iteration_bounds = array<i64: 1>, scalar_prefetch = 0 : i64, scratch_operands = 0 : i64, tpu.core_type = #tpu.core_type<tc>, window_params = [{pipeline_mode = #tpu.pipeline_mode<synchronous>, transform_indices = @transform_0, window_bounds = array<i64: 32, 128>}, {pipeline_mode = #tpu.pipeline_mode<synchronous>, transform_indices = @transform_1, window_bounds = array<i64: 1, 128>}, {pipeline_mode = #tpu.pipeline_mode<synchronous>, transform_indices = @transform_2, window_bounds = array<i64: 1, 128>}, {pipeline_mode = #tpu.pipeline_mode<synchronous>, transform_indices = @transform_3, window_bounds = array<i64: 1, 128>}, {pipeline_mode = #tpu.pipeline_mode<synchronous>, transform_indices = @transform_4, window_bounds = array<i64: 32, 128>}]} {
    %c0 = arith.constant 0 : index
    %c0_0 = arith.constant 0 : index
    %0 = vector.load %arg1[%c0, %c0_0] : memref<32x128xf32, #tpu.memory_space<vmem>>, vector<32x128xf32>
    %c0_1 = arith.constant 0 : index
    %c0_2 = arith.constant 0 : index
    %1 = vector.load %arg2[%c0_1, %c0_2] : memref<1x128xf32, #tpu.memory_space<vmem>>, vector<1x128xf32>
    %2 = vector.broadcast %1 : vector<1x128xf32> to vector<32x128xf32>
    %3 = arith.subf %0, %2 : vector<32x128xf32>
    %cst = arith.constant dense<0.000000e+00> : vector<128xf32>
    %4 = vector.multi_reduction <add>, %3, %cst [0] : vector<32x128xf32> to vector<128xf32>
    %5 = vector.shape_cast %4 : vector<128xf32> to vector<1x128xf32>
    %6 = arith.mulf %3, %3 : vector<32x128xf32>
    %cst_3 = arith.constant dense<0.000000e+00> : vector<128xf32>
    %7 = vector.multi_reduction <add>, %6, %cst_3 [0] : vector<32x128xf32> to vector<128xf32>
    %8 = vector.shape_cast %7 : vector<128xf32> to vector<1x128xf32>
    %c32_i32 = arith.constant 32 : i32
    %9 = tpu.dynamic_rotate %5 by %c32_i32 dim 1 : vector<1x128xf32>, i32 -> vector<1x128xf32>
    %10 = arith.addf %5, %9 : vector<1x128xf32>
    %c32_i32_4 = arith.constant 32 : i32
    %11 = tpu.dynamic_rotate %8 by %c32_i32_4 dim 1 : vector<1x128xf32>, i32 -> vector<1x128xf32>
    %12 = arith.addf %8, %11 : vector<1x128xf32>
    %c64_i32 = arith.constant 64 : i32
    %13 = tpu.dynamic_rotate %5 by %c64_i32 dim 1 : vector<1x128xf32>, i32 -> vector<1x128xf32>
    %14 = arith.addf %10, %13 : vector<1x128xf32>
    %c64_i32_5 = arith.constant 64 : i32
    %15 = tpu.dynamic_rotate %8 by %c64_i32_5 dim 1 : vector<1x128xf32>, i32 -> vector<1x128xf32>
    %16 = arith.addf %12, %15 : vector<1x128xf32>
    %c96_i32 = arith.constant 96 : i32
    %17 = tpu.dynamic_rotate %5 by %c96_i32 dim 1 : vector<1x128xf32>, i32 -> vector<1x128xf32>
    %18 = arith.addf %14, %17 : vector<1x128xf32>
    %c96_i32_6 = arith.constant 96 : i32
    %19 = tpu.dynamic_rotate %8 by %c96_i32_6 dim 1 : vector<1x128xf32>, i32 -> vector<1x128xf32>
    %20 = arith.addf %16, %19 : vector<1x128xf32>
    %cst_7 = arith.constant 7.812500e-03 : f32
    %21 = vector.broadcast %cst_7 : f32 to vector<1x128xf32>
    %22 = arith.mulf %18, %21 : vector<1x128xf32>
    %cst_8 = arith.constant 7.812500e-03 : f32
    %23 = vector.broadcast %cst_8 : f32 to vector<1x128xf32>
    %24 = arith.mulf %20, %23 : vector<1x128xf32>
    %25 = arith.mulf %22, %22 : vector<1x128xf32>
    %26 = arith.subf %24, %25 : vector<1x128xf32>
    %cst_9 = arith.constant 0.000000e+00 : f32
    %27 = vector.broadcast %cst_9 : f32 to vector<1x128xf32>
    %28 = arith.maximumf %26, %27 : vector<1x128xf32>
    %c0_10 = arith.constant 0 : index
    %c0_11 = arith.constant 0 : index
    %29 = vector.load %arg3[%c0_10, %c0_11] : memref<1x128xf32, #tpu.memory_space<vmem>>, vector<1x128xf32>
    %cst_12 = arith.constant 9.99999974E-6 : f32
    %30 = vector.broadcast %cst_12 : f32 to vector<1x128xf32>
    %31 = arith.addf %28, %30 : vector<1x128xf32>
    %32 = math.rsqrt %31 : vector<1x128xf32>
    %33 = arith.mulf %29, %32 : vector<1x128xf32>
    %34 = vector.broadcast %22 : vector<1x128xf32> to vector<32x128xf32>
    %35 = arith.subf %3, %34 : vector<32x128xf32>
    %36 = vector.broadcast %33 : vector<1x128xf32> to vector<32x128xf32>
    %37 = arith.mulf %35, %36 : vector<32x128xf32>
    %c0_13 = arith.constant 0 : index
    %c0_14 = arith.constant 0 : index
    %38 = vector.load %arg4[%c0_13, %c0_14] : memref<1x128xf32, #tpu.memory_space<vmem>>, vector<1x128xf32>
    %39 = vector.broadcast %38 : vector<1x128xf32> to vector<32x128xf32>
    %40 = arith.addf %37, %39 : vector<32x128xf32>
    %c0_15 = arith.constant 0 : index
    %c0_16 = arith.constant 0 : index
    %41 = vector.load %arg5[%c0_15, %c0_16] : memref<32x128xf32, #tpu.memory_space<vmem>>, vector<32x128xf32>
    tpu.vector_store %arg5[%c0_15, %c0_16], %40 {strides = array<i32>} : memref<32x128xf32, #tpu.memory_space<vmem>>, vector<32x128xf32>,
    return
  }
  func.func @transform_0(%arg0: i32) -> (i32, i32) {
    %c0_i32 = arith.constant 0 : i32
    %c0_i32_0 = arith.constant 0 : i32
    %c0_i32_1 = arith.constant 0 : i32
    return %c0_i32, %c0_i32_0 : i32, i32
  }
  func.func @transform_1(%arg0: i32) -> (i32, i32) {
    %c0_i32 = arith.constant 0 : i32
    %c0_i32_0 = arith.constant 0 : i32
    %c0_i32_1 = arith.constant 0 : i32
    return %c0_i32, %c0_i32_0 : i32, i32
  }
  func.func @transform_2(%arg0: i32) -> (i32, i32) {
    %c0_i32 = arith.constant 0 : i32
    %c0_i32_0 = arith.constant 0 : i32
    %c0_i32_1 = arith.constant 0 : i32
    return %c0_i32, %c0_i32_0 : i32, i32
  }
  func.func @transform_3(%arg0: i32) -> (i32, i32) {
    %c0_i32 = arith.constant 0 : i32
    %c0_i32_0 = arith.constant 0 : i32
    %c0_i32_1 = arith.constant 0 : i32
    return %c0_i32, %c0_i32_0 : i32, i32
  }
  func.func @transform_4(%arg0: i32) -> (i32, i32) {
    %c0_i32 = arith.constant 0 : i32
    %c0_i32_0 = arith.constant 0 : i32
    %c0_i32_1 = arith.constant 0 : i32
    return %c0_i32, %c0_i32_0 : i32, i32
  }
}

</mosaic_0001>

<llo_original>
// kernel: tpu_custom_call.1
$region0: #{tpu_custom_call.1}
  #allocation0 [shape = 'u32[]', space=smem, size = 0x4, offset = 0x4, fixed_abs, tag = 'smem constant byte address 0x4 - core index']
  #allocation1 [shape = 'u32[144,128]{1,0:T(1,128)}', space=vmem, size = 0x12000, scoped, tag = 'internal scratch']
  %s0 = inlined_call_operand.hbm [shape: f32[32,128], index: 0, kind: input, shape index: {}]
  %s1 = inlined_call_operand.vmem [shape: f32[1,128], index: 1, kind: input, shape index: {}]
  %s2 = inlined_call_operand.vmem [shape: f32[1,128], index: 2, kind: input, shape index: {}]
  %s3 = inlined_call_operand.vmem [shape: f32[1,128], index: 3, kind: input, shape index: {}]
  %s4 = inlined_call_operand.hbm [shape: f32[32,128], index: 4, kind: output, shape index: {}]
  %s5 = sld [smem:[#allocation0]]
  $region30: #{tpu_custom_call.1} parent=0
    _
  %s7 = ssub.s32 1, %s5
  %s8 = scalar_select 0, %s7, %s5
  $region1: #{tpu_custom_call.1} parent=0
    #allocation2 [shape = 'u8[16384]{0}', space=vmem, size = 0x4000, scoped, tag = 'input window, operand 0, single buffered']
    #allocation3 [shape = 's32[1]{0}', space=sflag, size = 0x4, scoped, tag = 'scoped memory for tpu_custom_call.1']
    #allocation4 [shape = 's32[1]{0}', space=sflag, size = 0x4, scoped, tag = 'scoped memory for tpu_custom_call.1']
    #allocation5 [shape = 'u8[16384]{0}', space=vmem, size = 0x4000, scoped, tag = 'output window, operand 0, single buffered']
    %9 = vsyncpa [#allocation3], 0
    %10 = vsyncpa [#allocation4], 0
    // Predicated region
    $region2: #{tpu_custom_call.1} parent=1 // pred_check
      _
    $region3: #{tpu_custom_call.1} parent=1 // pred_check_branch
      %12 = sbr.rel (0) target = $region5
    $region4: #{tpu_custom_call.1} parent=1 // pred_region
      %s14 = ssub.s32 512, 512
      %15 = vsyncadd [#allocation3], %s14
      %s16 = sshll.u32 [#allocation2], 4
      %s17 = int_to_ptr.vmem [resolvable:$true] %s16
      %22 = dma.hbm_to_vmem [thread:$0]  %s0, 512, %s17, [#allocation3], 128, 128, 8
    $region5: #{tpu_custom_call.1} parent=1 // pred_fallthru
      _
    // Predicated region
    $region6: #{tpu_custom_call.1} parent=1 // pred_check
      _
    $region7: #{tpu_custom_call.1} parent=1 // pred_check_branch
      %24 = sbr.rel (0) target = $region9
    $region8: #{tpu_custom_call.1} parent=1 // pred_region
      _
    $region9: #{tpu_custom_call.1} parent=1 // pred_fallthru
      _
    // Predicated region
    $region10: #{tpu_custom_call.1} parent=1 // pred_check
      _
    $region11: #{tpu_custom_call.1} parent=1 // pred_check_branch
      %26 = sbr.rel (0) target = $region13
    $region12: #{tpu_custom_call.1} parent=1 // pred_region
      _
    $region13: #{tpu_custom_call.1} parent=1 // pred_fallthru
      _
    // Predicated region
    $region14: #{tpu_custom_call.1} parent=1 // pred_check
      _
    $region15: #{tpu_custom_call.1} parent=1 // pred_check_branch
      %28 = sbr.rel (0) target = $region17
    $region16: #{tpu_custom_call.1} parent=1 // pred_region
      _
    $region17: #{tpu_custom_call.1} parent=1 // pred_fallthru
      _
    // Predicated region
    $region18: #{tpu_custom_call.1} parent=1 // pred_check
      _
    $region19: #{tpu_custom_call.1} parent=1 // pred_check_branch
      %30 = sbr.rel (0) target = $region21
    $region20: #{tpu_custom_call.1} parent=1 // pred_region
      %31 = dma.done [#allocation3], 512
    $region21: #{tpu_custom_call.1} parent=1 // pred_fallthru
      _
    %v32 = vld [vmem:[#allocation2] sm:$0xff]
    %v33 = vld [vmem:[#allocation2 + $0x8] sm:$0xff]
    %v34 = vld [vmem:[#allocation2 + $0x10] sm:$0xff]
    %v35 = vld [vmem:[#allocation2 + $0x18] sm:$0xff]
    %v36 = vld [vmem:[%s1] sm:$0x1]
    %v38 = vlaneseq
    %v39 = vshrl.u32 %v38, 7
    %v40 = vsub.s32 0, %v39
    %v41 = vrot.slane %v36, %v40
    %v43 = vsub.f32 %v32, %v41
    %v44 = vsub.f32 %v33, %v41
    %v45 = vsub.f32 %v34, %v41
    %v46 = vsub.f32 %v35, %v41
    %v47 = vadd.f32 %v43, %v44
    %v48 = vadd.f32 %v47, %v45
    %v49 = vadd.f32 %v48, %v46
    %v50 = vrot.slane %v49, 4
    %v51 = vadd.f32 %v49, %v50
    %v52 = vrot.slane %v51, 2
    %v53 = vadd.f32 %v51, %v52
    %v54 = vrot.slane %v53, 1
    %v55 = vadd.f32 %v53, %v54
    %v56 = vmul.f32 %v43, %v43
    %v57 = vmul.f32 %v44, %v44
    %v58 = vmul.f32 %v45, %v45
    %v59 = vmul.f32 %v46, %v46
    %v60 = vadd.f32 %v56, %v57
    %v61 = vadd.f32 %v60, %v58
    %v62 = vadd.f32 %v61, %v59
    %v63 = vrot.slane %v62, 4
    %v64 = vadd.f32 %v62, %v63
    %v65 = vrot.slane %v64, 2
    %v66 = vadd.f32 %v64, %v65
    %v67 = vrot.slane %v66, 1
    %v68 = vadd.f32 %v66, %v67
    %69 = vrot.lane.b32.xlu0 %v55, 32
    %v70 = vpop.permute.xlu0 %69
    %v71 = vadd.f32 %v55, %v70
    %72 = vrot.lane.b32.xlu0 %v68, 32
    %v73 = vpop.permute.xlu0 %72
    %v74 = vadd.f32 %v68, %v73
    %75 = vrot.lane.b32.xlu0 %v55, 64
    %v76 = vpop.permute.xlu0 %75
    %v77 = vadd.f32 %v71, %v76
    %78 = vrot.lane.b32.xlu0 %v68, 64
    %v79 = vpop.permute.xlu0 %78
    %v80 = vadd.f32 %v74, %v79
    %81 = vrot.lane.b32.xlu0 %v55, 96
    %v82 = vpop.permute.xlu0 %81
    %v83 = vadd.f32 %v77, %v82
    %84 = vrot.lane.b32.xlu0 %v68, 96
    %v85 = vpop.permute.xlu0 %84
    %v86 = vadd.f32 %v80, %v85
    %v87 = vmul.f32 %v83, 0.0078125
    %v88 = vmul.f32 %v86, 0.0078125
    %v89 = vmul.f32 %v87, %v87
    %v90 = vsub.f32 %v88, %v89
    %v91 = vmax.f32 %v90, 0.0
    %v92 = vld [vmem:[%s2] sm:$0x1]
    %v93 = vadd.f32 %v91, 1e-05
    %v94 = vrsqrt.pop %v93
    %v95 = vmul.f32 %v92, %v94
    %v96 = vlaneseq
    %v97 = vshrl.u32 %v96, 7
    %v98 = vsub.s32 0, %v97
    %v99 = vrot.slane %v87, %v98
    %v100 = vsub.f32 %v43, %v99
    %v101 = vsub.f32 %v44, %v99
    %v102 = vsub.f32 %v45, %v99
    %v103 = vsub.f32 %v46, %v99
    %v105 = vlaneseq
    %v106 = vshrl.u32 %v105, 7
    %v107 = vsub.s32 0, %v106
    %v108 = vrot.slane %v95, %v107
    %v110 = vmul.f32 %v100, %v108
    %v111 = vmul.f32 %v101, %v108
    %v112 = vmul.f32 %v102, %v108
    %v113 = vmul.f32 %v103, %v108
    %v114 = vld [vmem:[%s3] sm:$0x1]
    %v116 = vlaneseq
    %v117 = vshrl.u32 %v116, 7
    %v118 = vsub.s32 0, %v117
    %v119 = vrot.slane %v114, %v118
    %v121 = vadd.f32 %v110, %v119
    %v122 = vadd.f32 %v111, %v119
    %v123 = vadd.f32 %v112, %v119
    %v124 = vadd.f32 %v113, %v119
    %125 = vst [vmem:[#allocation5] sm:$0xff] %v121
    %126 = vst [vmem:[#allocation5 + $0x8] sm:$0xff] %v122
    %127 = vst [vmem:[#allocation5 + $0x10] sm:$0xff] %v123
    %128 = vst [vmem:[#allocation5 + $0x18] sm:$0xff] %v124
    // Predicated region
    $region22: #{tpu_custom_call.1} parent=1 // pred_check
      _
    $region23: #{tpu_custom_call.1} parent=1 // pred_check_branch
      %130 = sbr.rel (0) target = $region25
    $region24: #{tpu_custom_call.1} parent=1 // pred_region
      %s132 = ssub.s32 512, 512
      %133 = vsyncadd [#allocation4], %s132
      %s134 = sshll.u32 [#allocation5], 4
      %s135 = int_to_ptr.vmem [resolvable:$true] %s134
      %140 = dma.vmem_to_hbm [thread:$0]  %s135, 512, %s4, [#allocation4], 128, 128, 8
    $region25: #{tpu_custom_call.1} parent=1 // pred_fallthru
      _
    // Predicated region
    $region26: #{tpu_custom_call.1} parent=1 // pred_check
      _
    $region27: #{tpu_custom_call.1} parent=1 // pred_check_branch
      %142 = sbr.rel (0) target = $region29
    $region28: #{tpu_custom_call.1} parent=1 // pred_region
      %143 = dma.done [#allocation4], 512
    $region29: #{tpu_custom_call.1} parent=1 // pred_fallthru
      _
    %144 = vsyncpa [#allocation3], 1
    %145 = vsyncpa [#allocation4], 1

</llo_original>
